<compile_context>
chip_gen: v6e
topology: v6e:2x2x1
jax: 0.10.0
libtpu: 0.0.40
codegen_flags: <defaults>
</compile_context>

<pallas_src>
import functools

import jax
import jax.numpy as jnp
from jax.experimental import pallas as pl
from jax.experimental.pallas import tpu as pltpu

_LANE = 128
_MAX_ROWS_PER_STEP = 64   # fat steps amortize the ~600-cycle per-step pipeline cost


def _round_up(x, m):
    return (x + m - 1) // m * m


def _sublane_tile_rows(dtype):
    # Rows in one packed sublane tile: f32 -> 8, bf16 -> 16, int8/fp8 -> 32.
    itemsize = jnp.dtype(dtype).itemsize
    return max(8, 32 // max(itemsize, 1))


def _rows_per_step(batch, dtype):
    tile = _sublane_tile_rows(dtype)
    target = max(_MAX_ROWS_PER_STEP, tile)
    b_min = _round_up(max(batch, 1), tile)
    # Whole (padded) batch in one step when it is small; otherwise 64-row steps.
    return b_min if b_min <= target else target


def _vmem_capacity_bytes():
    try:
        return int(pltpu.get_tpu_info().vmem_capacity_bytes)
    except Exception:  # older jax / non-TPU trace: assume v7x's 64 MiB per core
        return 64 * 1024 * 1024


def _resident_budget_bytes():
    # ~45% of physical VMEM: ~57 MiB on v5e/v6e (128 MiB), ~28 MiB on v7x
    # (64 MiB per TensorCore), keeping headroom for output pipelining.
    return min(int(_vmem_capacity_bytes() * 0.45), 56 * 1024 * 1024)


@functools.lru_cache(maxsize=None)
def _single_buffer_supported():
    """Probe once whether pallas_call accepts pipeline_mode=pl.Buffered(1)."""
    try:
        spec = pl.BlockSpec((8, _LANE), lambda i: (0, 0),
                            pipeline_mode=pl.Buffered(1))
    except (AttributeError, TypeError):
        return False

    def _copy(x_ref, o_ref):
        o_ref[...] = x_ref[...]

    try:
        probe = pl.pallas_call(
            _copy,
            out_shape=jax.ShapeDtypeStruct((8, _LANE), jnp.float32),
            grid=(1,),
            in_specs=[spec],
            out_specs=pl.BlockSpec((8, _LANE), lambda i: (0, 0)),
        )
        jax.jit(probe).lower(
            jax.ShapeDtypeStruct((8, _LANE), jnp.float32)).compile()
        return True
    except Exception:
        return False


# ---------------------------------------------------------------------------
# Path 1: whole table resident in VMEM; dense full-tile output stores.
# ---------------------------------------------------------------------------
def _resident_gather_kernel(ids_ref, table_ref, out_ref, *, group):
    # ids_ref:   SMEM int32 [B_pad]      (scalar-prefetched class ids)
    # table_ref: VMEM [n_classes, D_pad] (constant block index => fetched once)
    # out_ref:   VMEM [rows, D_pad]      (dense output block for this step)
    step = pl.program_id(0)
    rows = out_ref.shape[0]
    base = step * rows
    for g in range(rows // group):
        vals = [
            table_ref[pl.ds(ids_ref[base + g * group + r], 1), :]
            for r in range(group)
        ]
        # One unmasked, full sublane-tile store per group (no vst.msk per row).
        out_ref[pl.ds(g * group, group), :] = jnp.concatenate(vals, axis=0)


def _class_embed_resident(ids_pad, table_pad, *, rows, vmem_limit_bytes):
    b_pad = ids_pad.shape[0]
    n_classes, d_pad = table_pad.shape
    group = _sublane_tile_rows(table_pad.dtype)
    kernel = functools.partial(_resident_gather_kernel, group=group)

    # Constant-index table block: double-buffering it is pure VMEM waste, so
    # single-buffer when the running JAX supports pipeline_mode.
    if _single_buffer_supported():
        table_spec = pl.BlockSpec((n_classes, d_pad), lambda i, ids: (0, 0),
                                  pipeline_mode=pl.Buffered(1))
    else:
        table_spec = pl.BlockSpec((n_classes, d_pad), lambda i, ids: (0, 0))

    return pl.pallas_call(
        kernel,
        out_shape=jax.ShapeDtypeStruct((b_pad, d_pad), table_pad.dtype),
        grid_spec=pltpu.PrefetchScalarGridSpec(
            num_scalar_prefetch=1,
            grid=(b_pad // rows,),
            in_specs=[table_spec],
            out_specs=pl.BlockSpec((rows, d_pad), lambda i, ids: (i, 0)),
        ),
        compiler_params=pltpu.CompilerParams(
            # Output blocks are independent: allow megacore sharding on v7x.
            dimension_semantics=("parallel",),
            vmem_limit_bytes=vmem_limit_bytes,
        ),
    )(ids_pad, table_pad)


# ---------------------------------------------------------------------------
# Path 2: large tables -> overlapping HBM row-gather DMAs straight into the
# output block (table is never staged in VMEM as a whole).
# ---------------------------------------------------------------------------
def _blocked_dma_gather_kernel(ids_ref, table_hbm, out_ref, sem):
    # ids_ref:   SMEM int32 [B_pad]
    # table_hbm: HBM [n_classes, D_pad]  (memory_space=pl.ANY -> manual DMA)
    # out_ref:   VMEM [rows, D_pad]
    # sem:       shared DMA semaphore (all row copies are identical in size)
    step = pl.program_id(0)
    rows = out_ref.shape[0]
    base = step * rows

    # Read every id from SMEM BEFORE the first DMA wait (waits break SMEM
    # store->load forwarding; keep all scalar/address work ahead of them).
    idxs = [ids_ref[base + r] for r in range(rows)]

    # Issue all row gathers so they overlap; destination is the output block
    # itself (no staging buffer, no extra VMEM load/store per row).
    copies = []
    for r in range(rows):
        cp = pltpu.make_async_copy(
            table_hbm.at[pl.ds(idxs[r], 1), :],
            out_ref.at[pl.ds(r, 1), :],
            sem,
        )
        cp.start()
        copies.append(cp)
    # All copies are the same size and share one semaphore: after the last
    # wait, every gathered row has landed in out_ref.
    for cp in copies:
        cp.wait()


def _class_embed_blocked(ids_pad, table_pad, *, rows):
    b_pad = ids_pad.shape[0]
    _, d_pad = table_pad.shape
    return pl.pallas_call(
        _blocked_dma_gather_kernel,
        out_shape=jax.ShapeDtypeStruct((b_pad, d_pad), table_pad.dtype),
        grid_spec=pltpu.PrefetchScalarGridSpec(
            num_scalar_prefetch=1,
            grid=(b_pad // rows,),
            in_specs=[pl.BlockSpec(memory_space=pl.ANY)],
            out_specs=pl.BlockSpec((rows, d_pad), lambda i, ids: (i, 0)),
            scratch_shapes=[pltpu.SemaphoreType.DMA(())],
        ),
        compiler_params=pltpu.CompilerParams(
            dimension_semantics=("parallel",),
        ),
    )(ids_pad, table_pad)


# ---------------------------------------------------------------------------
# Wrapper: ClassEmbedder.forward
# ---------------------------------------------------------------------------
@functools.partial(jax.jit, static_argnames=("embed_dim", "path"))
def class_embedder_forward(class_ids, embedding_table, *, embed_dim=None,
                           path="auto"):
    """Pallas equivalent of ClassEmbedder.forward.

    Args:
      class_ids:       int [B] class indices (PyTorch: batch[key]).
      embedding_table: [n_classes, D] embedding weights; ideally lane-padded
                       to a multiple of 128 once at init (ClassEmbedder does).
      embed_dim:       true embedding dim (<= D); defaults to D.
      path:            "auto" | "resident" | "blocked".

    Returns:
      [B, 1, embed_dim]  (PyTorch: embedding(batch[key][:, None])).
    """
    B = class_ids.shape[0]
    n_classes, d_in = embedding_table.shape
    if embed_dim is None:
        embed_dim = d_in

    d_pad = _round_up(d_in, _LANE)
    table_pad = embedding_table
    if d_pad != d_in:
        # Fallback for callers that did not pre-pad; ClassEmbedder pads once
        # in __init__, so this is off the steady-state path.
        table_pad = jnp.pad(embedding_table, ((0, 0), (0, d_pad - d_in)))
    itemsize = jnp.dtype(table_pad.dtype).itemsize

    # Clamp ids so a bad id can never drive an out-of-bounds access/DMA.
    # NOTE: silently maps out-of-range ids to valid rows (torch would raise).
    ids = jnp.clip(class_ids.astype(jnp.int32), 0, n_classes - 1)

    rows = _rows_per_step(B, table_pad.dtype)
    b_pad = _round_up(max(B, 1), rows)
    ids_pad = jnp.pad(ids, (0, b_pad - B))   # padded rows gather row 0

    out_block_bytes = rows * d_pad * itemsize
    table_bytes = n_classes * d_pad * itemsize
    gathered_bytes = b_pad * d_pad * itemsize
    # Conservative VMEM need: table possibly double-buffered (if Buffered(1)
    # is unavailable) + double-buffered output blocks + margin.
    vmem_need = 2 * table_bytes + 4 * out_block_bytes + (1 << 20)

    if path == "auto":
        fits = vmem_need <= _resident_budget_bytes()
        # The resident path streams the whole table HBM->VMEM each call (and
        # twice on v7x: each TensorCore fetches its own copy under "parallel"),
        # so it is only worth it when the gathered bytes are comparable to the
        # table size, or the table is tiny.
        worth = (table_bytes <= 4 * gathered_bytes) or (table_bytes <= (512 << 10))
        path = "resident" if (fits and worth) else "blocked"

    if path == "resident":
        cap = _vmem_capacity_bytes()
        vmem_limit = min(max(vmem_need + (4 << 20), 32 << 20), int(cap * 0.9))
        out2d = _class_embed_resident(ids_pad, table_pad, rows=rows,
                                      vmem_limit_bytes=vmem_limit)
    elif path == "blocked":
        out2d = _class_embed_blocked(ids_pad, table_pad, rows=rows)
    else:
        raise ValueError(f"unknown path: {path}")

    # [B, embed_dim] -> [B, 1, embed_dim]  (the `[:, None]` in the torch code)
    return out2d[:B, :embed_dim][:, None, :]


class ClassEmbedder:
    """Parameter container mirroring the torch module's __init__."""

    def __init__(self, embed_dim, n_classes=1000, key='class', rng=None):
        self.key = key
        self.n_classes = n_classes
        self.embed_dim = embed_dim
        if rng is None:
            rng = jax.random.PRNGKey(0)
        # nn.Embedding default init ~ N(0, 1); deterministic synthetic weights.
        w = jax.random.normal(rng, (n_classes, embed_dim), dtype=jnp.float32)
        self.embedding_weight = w
        # Lane-pad ONCE here (hoisted off the per-call critical path).
        d_pad = _round_up(embed_dim, _LANE)
        self.embedding_weight_padded = (
            w if d_pad == embed_dim
            else jnp.pad(w, ((0, 0), (0, d_pad - embed_dim))))

    def __call__(self, batch, key=None, path="auto"):
        if key is None:
            key = self.key
        return class_embedder_forward(batch[key], self.embedding_weight_padded,
                                      embed_dim=self.embed_dim, path=path)


if __name__ == "__main__":
    root = jax.random.PRNGKey(0)
    k_emb, k_ids, k_ids2 = jax.random.split(root, 3)

    # Small, module-consistent shapes.
    batch_size = 2
    n_classes = 16
    embed_dim = 128

    embedder = ClassEmbedder(embed_dim=embed_dim, n_classes=n_classes,
                             key='class', rng=k_emb)
    class_ids = jax.random.randint(k_ids, (batch_size,), 0, n_classes,
                                   dtype=jnp.int32)
    batch = {'class': class_ids}
    ref = embedder.embedding_weight[class_ids][:, None, :]

    # Primary path (auto -> resident-table gather for this tiny table).
    out = jax.block_until_ready(embedder(batch))
    assert out.shape == (batch_size, 1, embed_dim), out.shape
    assert jnp.allclose(out, ref), "auto/resident path mismatch vs reference"

    # Large-table fallback (HBM row-gather DMAs), forced so both paths run.
    out_blocked = jax.block_until_ready(embedder(batch, path="blocked"))
    assert out_blocked.shape == (batch_size, 1, embed_dim), out_blocked.shape
    assert jnp.allclose(out_blocked, ref), "blocked path mismatch vs reference"

    # Larger batch: multi-step grid, 64-row blocks, padded tail rows.
    big_b = 130
    big_ids = jax.random.randint(k_ids2, (big_b,), 0, n_classes,
                                 dtype=jnp.int32)
    big_ref = embedder.embedding_weight[big_ids][:, None, :]
    for p in ("resident", "blocked"):
        big_out = jax.block_until_ready(embedder({'class': big_ids}, path=p))
        assert big_out.shape == (big_b, 1, embed_dim), big_out.shape
        assert jnp.allclose(big_out, big_ref), f"{p} path mismatch (B={big_b})"

    print("KERNEL_OK")
</pallas_src>

<mosaic_0001>
module attributes {stable_mosaic.version = 11 : i64} {
  func.func @_resident_gather_kernel(%arg0: i32, %arg1: memref<8xi32, #tpu.memory_space<smem>>, %arg2: memref<16x128xf32, #tpu.memory_space<vmem>>, %arg3: memref<8x128xf32, #tpu.memory_space<vmem>>) attributes {dimension_semantics = [#tpu.dimension_semantics<parallel>], iteration_bounds = array<i64: 1>, scalar_prefetch = 1 : i64, scratch_operands = 0 : i64, tpu.core_type = #tpu.core_type<tc>, window_params = [{pipeline_mode = #tpu.pipeline_mode<synchronous>, transform_indices = @transform_0, window_bounds = array<i64: 16, 128>}, {transform_indices = @transform_1, window_bounds = array<i64: 8, 128>}]} {
    %c8_i32 = arith.constant 8 : i32
    %0 = arith.muli %arg0, %c8_i32 : i32
    %c0_i32 = arith.constant 0 : i32
    %1 = arith.addi %0, %c0_i32 : i32
    %c0_i32_0 = arith.constant 0 : i32
    %2 = arith.addi %1, %c0_i32_0 : i32
    %3 = arith.index_cast %2 : i32 to index
    %4 = memref.load %arg1[%3] : memref<8xi32, #tpu.memory_space<smem>>
    %5 = arith.index_cast %4 : i32 to index
    %c0 = arith.constant 0 : index
    %6 = vector.load %arg2[%5, %c0] : memref<16x128xf32, #tpu.memory_space<vmem>>, vector<1x128xf32>
    %c0_i32_1 = arith.constant 0 : i32
    %7 = arith.addi %0, %c0_i32_1 : i32
    %c1_i32 = arith.constant 1 : i32
    %8 = arith.addi %7, %c1_i32 : i32
    %9 = arith.index_cast %8 : i32 to index
    %10 = memref.load %arg1[%9] : memref<8xi32, #tpu.memory_space<smem>>
    %11 = arith.index_cast %10 : i32 to index
    %c0_2 = arith.constant 0 : index
    %12 = vector.load %arg2[%11, %c0_2] : memref<16x128xf32, #tpu.memory_space<vmem>>, vector<1x128xf32>
    %c0_i32_3 = arith.constant 0 : i32
    %13 = arith.addi %0, %c0_i32_3 : i32
    %c2_i32 = arith.constant 2 : i32
    %14 = arith.addi %13, %c2_i32 : i32
    %15 = arith.index_cast %14 : i32 to index
    %16 = memref.load %arg1[%15] : memref<8xi32, #tpu.memory_space<smem>>
    %17 = arith.index_cast %16 : i32 to index
    %c0_4 = arith.constant 0 : index
    %18 = vector.load %arg2[%17, %c0_4] : memref<16x128xf32, #tpu.memory_space<vmem>>, vector<1x128xf32>
    %c0_i32_5 = arith.constant 0 : i32
    %19 = arith.addi %0, %c0_i32_5 : i32
    %c3_i32 = arith.constant 3 : i32
    %20 = arith.addi %19, %c3_i32 : i32
    %21 = arith.index_cast %20 : i32 to index
    %22 = memref.load %arg1[%21] : memref<8xi32, #tpu.memory_space<smem>>
    %23 = arith.index_cast %22 : i32 to index
    %c0_6 = arith.constant 0 : index
    %24 = vector.load %arg2[%23, %c0_6] : memref<16x128xf32, #tpu.memory_space<vmem>>, vector<1x128xf32>
    %c0_i32_7 = arith.constant 0 : i32
    %25 = arith.addi %0, %c0_i32_7 : i32
    %c4_i32 = arith.constant 4 : i32
    %26 = arith.addi %25, %c4_i32 : i32
    %27 = arith.index_cast %26 : i32 to index
    %28 = memref.load %arg1[%27] : memref<8xi32, #tpu.memory_space<smem>>
    %29 = arith.index_cast %28 : i32 to index
    %c0_8 = arith.constant 0 : index
    %30 = vector.load %arg2[%29, %c0_8] : memref<16x128xf32, #tpu.memory_space<vmem>>, vector<1x128xf32>
    %c0_i32_9 = arith.constant 0 : i32
    %31 = arith.addi %0, %c0_i32_9 : i32
    %c5_i32 = arith.constant 5 : i32
    %32 = arith.addi %31, %c5_i32 : i32
    %33 = arith.index_cast %32 : i32 to index
    %34 = memref.load %arg1[%33] : memref<8xi32, #tpu.memory_space<smem>>
    %35 = arith.index_cast %34 : i32 to index
    %c0_10 = arith.constant 0 : index
    %36 = vector.load %arg2[%35, %c0_10] : memref<16x128xf32, #tpu.memory_space<vmem>>, vector<1x128xf32>
    %c0_i32_11 = arith.constant 0 : i32
    %37 = arith.addi %0, %c0_i32_11 : i32
    %c6_i32 = arith.constant 6 : i32
    %38 = arith.addi %37, %c6_i32 : i32
    %39 = arith.index_cast %38 : i32 to index
    %40 = memref.load %arg1[%39] : memref<8xi32, #tpu.memory_space<smem>>
    %41 = arith.index_cast %40 : i32 to index
    %c0_12 = arith.constant 0 : index
    %42 = vector.load %arg2[%41, %c0_12] : memref<16x128xf32, #tpu.memory_space<vmem>>, vector<1x128xf32>
    %c0_i32_13 = arith.constant 0 : i32
    %43 = arith.addi %0, %c0_i32_13 : i32
    %c7_i32 = arith.constant 7 : i32
    %44 = arith.addi %43, %c7_i32 : i32
    %45 = arith.index_cast %44 : i32 to index
    %46 = memref.load %arg1[%45] : memref<8xi32, #tpu.memory_space<smem>>
    %47 = arith.index_cast %46 : i32 to index
    %c0_14 = arith.constant 0 : index
    %48 = vector.load %arg2[%47, %c0_14] : memref<16x128xf32, #tpu.memory_space<vmem>>, vector<1x128xf32>
    %49 = tpu.concatenate %6, %12, %18, %24, %30, %36, %42, %48 in 0 : vector<1x128xf32>, vector<1x128xf32>, vector<1x128xf32>, vector<1x128xf32>, vector<1x128xf32>, vector<1x128xf32>, vector<1x128xf32>, vector<1x128xf32> -> vector<8x128xf32>
    %c0_15 = arith.constant 0 : index
    %c0_16 = arith.constant 0 : index
    %50 = vector.load %arg3[%c0_15, %c0_16] : memref<8x128xf32, #tpu.memory_space<vmem>>, vector<8x128xf32>
    tpu.vector_store %arg3[%c0_15, %c0_16], %49 {strides = array<i32>} : memref<8x128xf32, #tpu.memory_space<vmem>>, vector<8x128xf32>,
    return
  }
  func.func @transform_0(%arg0: i32, %arg1: memref<8xi32, #tpu.memory_space<smem>>) -> (i32, i32) {
    %c0_i32 = arith.constant 0 : i32
    %c0_i32_0 = arith.constant 0 : i32
    %c0_i32_1 = arith.constant 0 : i32
    return %c0_i32, %c0_i32_0 : i32, i32
  }
  func.func @transform_1(%arg0: i32, %arg1: memref<8xi32, #tpu.memory_space<smem>>) -> (i32, i32) {
    %c0_i32 = arith.constant 0 : i32
    %c0_i32_0 = arith.constant 0 : i32
    return %arg0, %c0_i32 : i32, i32
  }
}

</mosaic_0001>

<llo_original>
// kernel: class_embedder_forward.1
$region0: #{class_embedder_forward.1}
  #allocation0 [shape = 'u32[]', space=smem, size = 0x4, offset = 0x4, fixed_abs, tag = 'smem constant byte address 0x4 - core index']
  #allocation1 [shape = 'u32[144,128]{1,0:T(1,128)}', space=vmem, size = 0x12000, scoped, tag = 'internal scratch']
  #allocation2 [shape = 's32[1]{0}', space=sflag, size = 0x4, scoped, tag = 'scoped memory for class_embedder_forward.1']
  #allocation3 [shape = 'u8[512]{0}', space=smem, size = 0x200, scoped, tag = 'prefetched SMEM operand 0']
  %s0 = inlined_call_operand.vmem [shape: s32[8], index: 0, kind: input, shape index: {}]
  %s1 = inlined_call_operand.hbm [shape: f32[16,128], index: 1, kind: input, shape index: {}]
  %s2 = inlined_call_operand.vmem [shape: f32[8,128], index: 2, kind: output, shape index: {}]
  %s3 = sld [smem:[#allocation0]]
  $region18: #{class_embedder_forward.1} parent=0
    _
  %s5 = ssub.s32 1, %s3
  %s6 = scalar_select 0, %s5, %s3
  %s7 = sshll.u32 %s0, 4
  %s8 = int_to_ptr.vmem [resolvable:$true] %s7
  %10 = dma.vmem_to_smem %s8, 16, [#allocation3], [#allocation2]
  %11 = dma.done [#allocation2], 16
  %12 = sfence
  $region1: #{class_embedder_forward.1} parent=0
    #allocation4 [shape = 'u8[8192]{0}', space=vmem, size = 0x2000, scoped, tag = 'input window, operand 1, single buffered']
    #allocation5 [shape = 's32[1]{0}', space=sflag, size = 0x4, scoped, tag = 'scoped memory for class_embedder_forward.1']
    %13 = vsyncpa [#allocation5], 0
    // Predicated region
    $region2: #{class_embedder_forward.1} parent=1 // pred_check
      _
    $region3: #{class_embedder_forward.1} parent=1 // pred_check_branch
      %15 = sbr.rel (0) target = $region5
    $region4: #{class_embedder_forward.1} parent=1 // pred_region
      %s17 = ssub.s32 256, 256
      %18 = vsyncadd [#allocation5], %s17
      %s19 = sshll.u32 [#allocation4], 4
      %s20 = int_to_ptr.vmem [resolvable:$true] %s19
      %25 = dma.hbm_to_vmem [thread:$0]  %s1, 256, %s20, [#allocation5], 128, 128, 8
    $region5: #{class_embedder_forward.1} parent=1 // pred_fallthru
      _
    // Predicated region
    $region6: #{class_embedder_forward.1} parent=1 // pred_check
      _
    $region7: #{class_embedder_forward.1} parent=1 // pred_check_branch
      %27 = sbr.rel (0) target = $region9
    $region8: #{class_embedder_forward.1} parent=1 // pred_region
      %28 = dma.done [#allocation5], 256
    $region9: #{class_embedder_forward.1} parent=1 // pred_fallthru
      _
    %s29 = smul.u32 0, 8
    %s30 = sld [smem:[#allocation3 + %s29]]
    %s31 = scalar_lea.vmem [#allocation4], %s30
    %v32 = vld [vmem:[%s31] sm:$0x1]
    %s33 = sadd.s32 %s29, 1
    %s34 = sld [smem:[#allocation3 + %s33]]
    %s35 = scalar_lea.vmem [#allocation4], %s34
    %v36 = vld [vmem:[%s35] sm:$0x1]
    %s37 = sadd.s32 %s29, 2
    %s38 = sld [smem:[#allocation3 + %s37]]
    %s39 = scalar_lea.vmem [#allocation4], %s38
    %v40 = vld [vmem:[%s39] sm:$0x1]
    %s41 = sadd.s32 %s29, 3
    %s42 = sld [smem:[#allocation3 + %s41]]
    %s43 = scalar_lea.vmem [#allocation4], %s42
    %v44 = vld [vmem:[%s43] sm:$0x1]
    %s45 = sadd.s32 %s29, 4
    %s46 = sld [smem:[#allocation3 + %s45]]
    %s47 = scalar_lea.vmem [#allocation4], %s46
    %v48 = vld [vmem:[%s47] sm:$0x1]
    %s49 = sadd.s32 %s29, 5
    %s50 = sld [smem:[#allocation3 + %s49]]
    %s51 = scalar_lea.vmem [#allocation4], %s50
    %v52 = vld [vmem:[%s51] sm:$0x1]
    %s53 = sadd.s32 %s29, 6
    %s54 = sld [smem:[#allocation3 + %s53]]
    %s55 = scalar_lea.vmem [#allocation4], %s54
    %v56 = vld [vmem:[%s55] sm:$0x1]
    %s57 = sadd.s32 %s29, 7
    %s58 = sld [smem:[#allocation3 + %s57]]
    %s59 = scalar_lea.vmem [#allocation4], %s58
    %v60 = vld [vmem:[%s59] sm:$0x1]
    %v62 = vrot.slane %v36, 7
    %v65 = vrot.slane %v40, 6
    %v68 = vrot.slane %v44, 5
    %v71 = vrot.slane %v48, 4
    %v74 = vrot.slane %v52, 3
    %v77 = vrot.slane %v56, 2
    %v80 = vrot.slane %v60, 1
    %vm82 = vcmask 1040384
    %v83 = vsel %vm82, %v32, %v62
    %vm84 = vcmask 1041408
    %v85 = vsel %vm84, %v83, %v65
    %vm86 = vcmask 1042432
    %v87 = vsel %vm86, %v85, %v68
    %vm88 = vcmask 1043456
    %v89 = vsel %vm88, %v87, %v71
    %vm90 = vcmask 1044480
    %v91 = vsel %vm90, %v89, %v74
    %vm92 = vcmask 1045504
    %v93 = vsel %vm92, %v91, %v77
    %vm94 = vcmask 1046528
    %v95 = vsel %vm94, %v93, %v80
    %96 = vst [vmem:[%s2] sm:$0xff] %v95
    // Predicated region
    $region10: #{class_embedder_forward.1} parent=1 // pred_check
      _
    $region11: #{class_embedder_forward.1} parent=1 // pred_check_branch
      %98 = sbr.rel (0) target = $region13
    $region12: #{class_embedder_forward.1} parent=1 // pred_region
      _
    $region13: #{class_embedder_forward.1} parent=1 // pred_fallthru
      _
    // Predicated region
    $region14: #{class_embedder_forward.1} parent=1 // pred_check
      _
    $region15: #{class_embedder_forward.1} parent=1 // pred_check_branch
      %100 = sbr.rel (0) target = $region17
    $region16: #{class_embedder_forward.1} parent=1 // pred_region
      _
    $region17: #{class_embedder_forward.1} parent=1 // pred_fallthru
      _
    %101 = vsyncpa [#allocation5], 1

</llo_original>
